<compile_context>
chip_gen: v5e
topology: v5e:2x2
jax: 0.10.0
libtpu: 0.0.40
codegen_flags: <defaults>
</compile_context>

<pallas_src>
import jax
import jax.numpy as jnp
from jax.experimental import pallas as pl
from jax.experimental.pallas import tpu as pltpu


def _embed_kernel(x_ref, w_ref, add_ref, o_ref):
    """out[b] = x[b] @ w + add   (f32 accumulate, cast only at the store).

    x_ref:   (B, P+1, Kp)  zero-row-augmented patches, B images per grid step
    w_ref:   (Kp, Dc)      flattened conv weight, current column tile (resident)
    add_ref: (P+1, Dc)     row 0: cls_token + pos_embed[0];
                           rows 1..P: conv_bias + pos_embed[1:]   (f32, resident)
    o_ref:   (B, P+1, Dc)
    """
    w = w_ref[...]
    add = add_ref[...]
    # Static unroll over the per-step image block: B independent rank-2 MXU
    # matmuls (keeps dot operands 2D -> lowers cleanly on every generation,
    # and the unroll gives the LLO scheduler full visibility).
    for b in range(x_ref.shape[0]):
        acc = jnp.dot(x_ref[b], w, preferred_element_type=jnp.float32)
        o_ref[b] = (acc + add).astype(o_ref.dtype)


def embedding_forward(x_nchw, conv_w, conv_b, cls_token, pos_embed, patch_size,
                      *, matmul_dtype=jnp.bfloat16, out_dtype=None,
                      batch_block=4):
    """x_nchw: (N, C, H, W). Returns (N, num_patches + 1, embed_dim)."""
    N, C, H, W = x_nchw.shape
    D = conv_w.shape[0]
    ps = patch_size
    assert H % ps == 0 and W % ps == 0, "image size must be divisible by patch size"
    hp, wp = H // ps, W // ps
    P = hp * wp
    K = C * ps * ps

    LANE = 128
    Kp = ((K + LANE - 1) // LANE) * LANE        # lane-dense x loads / MXU K passes
    if out_dtype is None:
        out_dtype = x_nchw.dtype

    # Per-step image block (cap 4 -> fits v5e's 16 MiB scoped-VMEM default for
    # ViT-B/224 with double-buffered x/out blocks + resident w/add).
    B = min(N, batch_block)
    nb = -(-N // B)                              # cdiv
    Npad = nb * B

    # Embed-dim column split: second parallel grid axis (v7x megacore) whenever
    # both column tiles stay lane-dense.
    ncol = 2 if (D % (2 * LANE) == 0) else 1
    Dc = D // ncol

    # --- glue: im2col (matches Conv2d stride=kernel_size) -------------------
    # (N,C,hp,ps,wp,ps) -> (N,hp,wp,C,ps,ps) -> (N,P,K).  The transpose, the
    # zero-row / zero-column / batch pad and the dtype cast fuse into one pass.
    patches = x_nchw.reshape(N, C, hp, ps, wp, ps)
    patches = jnp.transpose(patches, (0, 2, 4, 1, 3, 5)).reshape(N, P, K)
    # Prepend a zero patch row (its matmul result is 0, so the add matrix alone
    # produces the cls row), pad K to a lane multiple and N to a B multiple.
    x_aug = jnp.pad(patches,
                    ((0, Npad - N), (1, 0), (0, Kp - K))).astype(matmul_dtype)

    # Conv2d weight (D, C, ps, ps) -> (K, D), zero rows for the K pad.
    w_mat = conv_w.reshape(D, K).T
    w_mat = jnp.pad(w_mat, ((0, Kp - K), (0, 0))).astype(matmul_dtype)

    # Fused additive matrix (f32, computed once in glue, VMEM-resident):
    #   row 0      = cls_token + pos_embed[0]          (no conv bias)
    #   rows 1..P  = conv_bias + pos_embed[1:]
    add = jnp.concatenate(
        [(cls_token[0, 0, :] + pos_embed[0, 0, :])[None, :],
         conv_b[None, :] + pos_embed[0, 1:, :]],
        axis=0).astype(jnp.float32)                  # (P+1, D)

    out = pl.pallas_call(
        _embed_kernel,
        out_shape=jax.ShapeDtypeStruct((Npad, P + 1, D), out_dtype),
        grid_spec=pltpu.PrefetchScalarGridSpec(
            num_scalar_prefetch=0,
            grid=(nb, ncol),                         # column axis innermost ->
            in_specs=[                               # x block not re-fetched per j
                pl.BlockSpec((B, P + 1, Kp), lambda n, j: (n, 0, 0)),
                pl.BlockSpec((Kp, Dc),       lambda n, j: (0, j)),   # resident
                pl.BlockSpec((P + 1, Dc),    lambda n, j: (0, j)),   # resident
            ],
            out_specs=pl.BlockSpec((B, P + 1, Dc), lambda n, j: (n, 0, j)),
        ),
        compiler_params=pltpu.CompilerParams(
            dimension_semantics=("parallel", "parallel")),
    )(x_aug, w_mat, add)

    if Npad != N:
        out = out[:N]                                # no-op when N % B == 0
    return out


def reference_forward(x_nchw, conv_w, conv_b, cls_token, pos_embed, patch_size):
    """Pure-JAX reference (conv via lax.conv_general_dilated), for checking."""
    N = x_nchw.shape[0]
    D = conv_w.shape[0]
    y = jax.lax.conv_general_dilated(
        x_nchw, conv_w, window_strides=(patch_size, patch_size),
        padding="VALID", dimension_numbers=("NCHW", "OIHW", "NCHW"))
    y = y + conv_b.reshape(1, D, 1, 1)
    y = y.reshape(N, D, -1).transpose(0, 2, 1)       # (N, P, D)
    cls = jnp.broadcast_to(cls_token, (N, 1, D))
    y = jnp.concatenate([cls, y], axis=1)
    return y + pos_embed


def _make_params(key, in_chans, embed_dim, patch_size, num_patches):
    kw, kb, kp = jax.random.split(key, 3)
    conv_w = jax.random.normal(
        kw, (embed_dim, in_chans, patch_size, patch_size), jnp.float32) * 0.02
    conv_b = jax.random.normal(kb, (embed_dim,), jnp.float32) * 0.02
    cls_token = jnp.zeros((1, 1, embed_dim), jnp.float32)
    # trunc_normal_(std=0.02): normal then clamp to +/- 2*std
    pos_embed = jnp.clip(
        jax.random.normal(kp, (1, num_patches + 1, embed_dim), jnp.float32) * 0.02,
        -0.04, 0.04)
    return conv_w, conv_b, cls_token, pos_embed


def _run_config(key, batch, in_chans, embed_dim, img_size, patch_size):
    num_patches = (img_size // patch_size) ** 2
    kx, kparam = jax.random.split(key)
    x = jax.random.normal(kx, (batch, in_chans, img_size, img_size), jnp.float32)
    conv_w, conv_b, cls_token, pos_embed = _make_params(
        kparam, in_chans, embed_dim, patch_size, num_patches)

    ref = reference_forward(x, conv_w, conv_b, cls_token, pos_embed, patch_size)

    # Exact-path check: f32 matmul operands, f32 output (tight tolerance).
    out_f32 = embedding_forward(x, conv_w, conv_b, cls_token, pos_embed,
                                patch_size, matmul_dtype=jnp.float32,
                                out_dtype=jnp.float32)
    out_f32 = jax.block_until_ready(out_f32)
    assert out_f32.shape == (batch, num_patches + 1, embed_dim), out_f32.shape
    assert jnp.allclose(out_f32, ref, atol=2e-4, rtol=2e-4), "f32 path mismatch"

    # Fast path: bf16 matmul operands, f32 accumulate, bf16 output store
    # (halves the dominant HBM writeback stream).
    out_bf16 = embedding_forward(x, conv_w, conv_b, cls_token, pos_embed,
                                 patch_size, matmul_dtype=jnp.bfloat16,
                                 out_dtype=jnp.bfloat16)
    out_bf16 = jax.block_until_ready(out_bf16)
    assert out_bf16.shape == (batch, num_patches + 1, embed_dim), out_bf16.shape
    assert jnp.allclose(out_bf16.astype(jnp.float32), ref,
                        atol=2e-2, rtol=2e-2), "bf16 path mismatch"


if __name__ == "__main__":
    key = jax.random.PRNGKey(0)
    k1, k2 = jax.random.split(key)

    # Config 1: small ViT-ish shapes from the module spec
    # (single grid step, single column tile, sub-lane-width D).
    _run_config(k1, batch=2, in_chans=4, embed_dim=32, img_size=16, patch_size=4)

    # Config 2: exercises per-step image batching (B=4, batch pad 5->8),
    # K padding (147->256) and the 2-way embed-dim column split (D=256).
    _run_config(k2, batch=5, in_chans=3, embed_dim=256, img_size=28, patch_size=7)

    print("KERNEL_OK")
</pallas_src>

<mosaic_0001>
module attributes {stable_mosaic.version = 11 : i64} {
  func.func @_embed_kernel(%arg0: i32, %arg1: i32, %arg2: memref<2x17x128xf32, #tpu.memory_space<vmem>>, %arg3: memref<128x32xf32, #tpu.memory_space<vmem>>, %arg4: memref<17x32xf32, #tpu.memory_space<vmem>>, %arg5: memref<2x17x32xf32, #tpu.memory_space<vmem>>) attributes {dimension_semantics = [#tpu.dimension_semantics<parallel>, #tpu.dimension_semantics<parallel>], iteration_bounds = array<i64: 1, 1>, scalar_prefetch = 0 : i64, scratch_operands = 0 : i64, tpu.core_type = #tpu.core_type<tc>, window_params = [{transform_indices = @transform_0, window_bounds = array<i64: 2, 17, 128>}, {transform_indices = @transform_1, window_bounds = array<i64: 128, 32>}, {transform_indices = @transform_2, window_bounds = array<i64: 17, 32>}, {transform_indices = @transform_3, window_bounds = array<i64: 2, 17, 32>}]} {
    %c0 = arith.constant 0 : index
    %c0_0 = arith.constant 0 : index
    %0 = vector.load %arg3[%c0, %c0_0] : memref<128x32xf32, #tpu.memory_space<vmem>>, vector<128x32xf32>
    %c0_1 = arith.constant 0 : index
    %c0_2 = arith.constant 0 : index
    %1 = vector.load %arg4[%c0_1, %c0_2] : memref<17x32xf32, #tpu.memory_space<vmem>>, vector<17x32xf32>
    %c0_3 = arith.constant 0 : index
    %c0_4 = arith.constant 0 : index
    %c0_5 = arith.constant 0 : index
    %2 = vector.load %arg2[%c0_3, %c0_4, %c0_5] : memref<2x17x128xf32, #tpu.memory_space<vmem>>, vector<1x17x128xf32>
    %3 = vector.shape_cast %2 : vector<1x17x128xf32> to vector<17x128xf32>
    %cst = arith.constant dense<0.000000e+00> : vector<17x32xf32>
    %4 = tpu.matmul %3, %0, %cst {dimension_numbers = #tpu.dot_dimension_numbers<[1], [0], [0], [1], [0, 0, 1, 1], [], []>} : vector<17x128xf32>, vector<128x32xf32>, vector<17x32xf32> -> vector<17x32xf32>
    %5 = arith.addf %4, %1 : vector<17x32xf32>
    %c0_6 = arith.constant 0 : index
    %c0_7 = arith.constant 0 : index
    %c0_8 = arith.constant 0 : index
    %6 = vector.load %arg5[%c0_6, %c0_7, %c0_8] : memref<2x17x32xf32, #tpu.memory_space<vmem>>, vector<1x17x32xf32>
    %7 = vector.shape_cast %6 : vector<1x17x32xf32> to vector<17x32xf32>
    %8 = vector.shape_cast %5 : vector<17x32xf32> to vector<1x17x32xf32>
    tpu.vector_store %arg5[%c0_6, %c0_7, %c0_8], %8 {strides = array<i32>} : memref<2x17x32xf32, #tpu.memory_space<vmem>>, vector<1x17x32xf32>,
    %c1 = arith.constant 1 : index
    %c0_9 = arith.constant 0 : index
    %c0_10 = arith.constant 0 : index
    %9 = vector.load %arg2[%c1, %c0_9, %c0_10] : memref<2x17x128xf32, #tpu.memory_space<vmem>>, vector<1x17x128xf32>
    %10 = vector.shape_cast %9 : vector<1x17x128xf32> to vector<17x128xf32>
    %cst_11 = arith.constant dense<0.000000e+00> : vector<17x32xf32>
    %11 = tpu.matmul %10, %0, %cst_11 {dimension_numbers = #tpu.dot_dimension_numbers<[1], [0], [0], [1], [0, 0, 1, 1], [], []>} : vector<17x128xf32>, vector<128x32xf32>, vector<17x32xf32> -> vector<17x32xf32>
    %12 = arith.addf %11, %1 : vector<17x32xf32>
    %c1_12 = arith.constant 1 : index
    %c0_13 = arith.constant 0 : index
    %c0_14 = arith.constant 0 : index
    %13 = vector.load %arg5[%c1_12, %c0_13, %c0_14] : memref<2x17x32xf32, #tpu.memory_space<vmem>>, vector<1x17x32xf32>
    %14 = vector.shape_cast %13 : vector<1x17x32xf32> to vector<17x32xf32>
    %15 = vector.shape_cast %12 : vector<17x32xf32> to vector<1x17x32xf32>
    tpu.vector_store %arg5[%c1_12, %c0_13, %c0_14], %15 {strides = array<i32>} : memref<2x17x32xf32, #tpu.memory_space<vmem>>, vector<1x17x32xf32>,
    return
  }
  func.func @transform_0(%arg0: i32, %arg1: i32) -> (i32, i32, i32) {
    %c0_i32 = arith.constant 0 : i32
    %c0_i32_0 = arith.constant 0 : i32
    %c0_i32_1 = arith.constant 0 : i32
    return %arg0, %c0_i32, %c0_i32_0 : i32, i32, i32
  }
  func.func @transform_1(%arg0: i32, %arg1: i32) -> (i32, i32) {
    %c0_i32 = arith.constant 0 : i32
    %c0_i32_0 = arith.constant 0 : i32
    return %c0_i32, %arg1 : i32, i32
  }
  func.func @transform_2(%arg0: i32, %arg1: i32) -> (i32, i32) {
    %c0_i32 = arith.constant 0 : i32
    %c0_i32_0 = arith.constant 0 : i32
    return %c0_i32, %arg1 : i32, i32
  }
  func.func @transform_3(%arg0: i32, %arg1: i32) -> (i32, i32, i32) {
    %c0_i32 = arith.constant 0 : i32
    %c0_i32_0 = arith.constant 0 : i32
    return %arg0, %c0_i32, %arg1 : i32, i32, i32
  }
}

</mosaic_0001>

<llo_original>
// kernel: tpu_custom_call.1
$region0: #{tpu_custom_call.1}
  #allocation0 [shape = 'u32[]', space=smem, size = 0x4, offset = 0x4, fixed_abs, tag = 'smem constant byte address 0x4 - core index']
  #allocation1 [shape = 'u32[72,128]{1,0:T(1,128)}', space=vmem, size = 0x9000, scoped, tag = 'internal scratch']
  %s0 = inlined_call_operand.vmem [shape: f32[2,17,128], index: 0, kind: input, shape index: {}]
  %s1 = inlined_call_operand.vmem [shape: f32[128,32], index: 1, kind: input, shape index: {}]
  %s2 = inlined_call_operand.vmem [shape: f32[17,32], index: 2, kind: input, shape index: {}]
  %s3 = inlined_call_operand.vmem [shape: f32[2,17,32], index: 3, kind: output, shape index: {}]
  %s4 = sld [smem:[#allocation0]]
  $region22: #{tpu_custom_call.1} parent=0
    _
  %s6 = ssub.s32 1, %s4
  %s7 = scalar_select 0, %s6, %s4
  // Predicated region
  $region2: #{tpu_custom_call.1} parent=0 // pred_check
    _
  $region3: #{tpu_custom_call.1} parent=0 // pred_check_branch
    %9 = sbr.rel (0) target = $region5
  $region4: #{tpu_custom_call.1} parent=0 // pred_region
    _
  $region5: #{tpu_custom_call.1} parent=0 // pred_fallthru
    _
  // Predicated region
  $region6: #{tpu_custom_call.1} parent=0 // pred_check
    _
  $region7: #{tpu_custom_call.1} parent=0 // pred_check_branch
    %11 = sbr.rel (0) target = $region9
  $region8: #{tpu_custom_call.1} parent=0 // pred_region
    _
  $region9: #{tpu_custom_call.1} parent=0 // pred_fallthru
    _
  // Predicated region
  $region10: #{tpu_custom_call.1} parent=0 // pred_check
    _
  $region11: #{tpu_custom_call.1} parent=0 // pred_check_branch
    %13 = sbr.rel (0) target = $region13
  $region12: #{tpu_custom_call.1} parent=0 // pred_region
    _
  $region13: #{tpu_custom_call.1} parent=0 // pred_fallthru
    _
  %v14 = vld [vmem:[%s1] sm:$0xff]
  %v15 = vld [vmem:[%s1 + $0x8] sm:$0xff]
  %v16 = vld [vmem:[%s1 + $0x10] sm:$0xff]
  %v17 = vld [vmem:[%s1 + $0x18] sm:$0xff]
  %v18 = vld [vmem:[%s1 + $0x20] sm:$0xff]
  %v19 = vld [vmem:[%s1 + $0x28] sm:$0xff]
  %v20 = vld [vmem:[%s1 + $0x30] sm:$0xff]
  %v21 = vld [vmem:[%s1 + $0x38] sm:$0xff]
  %v22 = vld [vmem:[%s1 + $0x40] sm:$0xff]
  %v23 = vld [vmem:[%s1 + $0x48] sm:$0xff]
  %v24 = vld [vmem:[%s1 + $0x50] sm:$0xff]
  %v25 = vld [vmem:[%s1 + $0x58] sm:$0xff]
  %v26 = vld [vmem:[%s1 + $0x60] sm:$0xff]
  %v27 = vld [vmem:[%s1 + $0x68] sm:$0xff]
  %v28 = vld [vmem:[%s1 + $0x70] sm:$0xff]
  %v29 = vld [vmem:[%s1 + $0x78] sm:$0xff]
  %v30 = vld [vmem:[%s2] sm:$0xff]
  %v31 = vld [vmem:[%s2 + $0x8] sm:$0xff]
  %v32 = vld [vmem:[%s2 + $0x10] sm:$0x1]
  %v33 = vld [vmem:[%s0] sm:$0xff]
  %v34 = vld [vmem:[%s0 + $0x8] sm:$0xff]
  %v35 = vld [vmem:[%s0 + $0x10] sm:$0x1]
  %36 = vmatpush.msra.mxu0 %v29
  %37 = vmatpush.msra.mxu0 %v28
  %38 = vmatpush.msra.mxu0 %v27
  %39 = vmatpush.msra.mxu0 %v26
  %40 = vmatpush.msra.mxu0 %v25
  %41 = vmatpush.msra.mxu0 %v24
  %42 = vmatpush.msra.mxu0 %v23
  %43 = vmatpush.msra.mxu0 %v22
  %44 = vmatpush.msra.mxu0 %v21
  %45 = vmatpush.msra.mxu0 %v20
  %46 = vmatpush.msra.mxu0 %v19
  %47 = vmatpush.msra.mxu0 %v18
  %48 = vmatpush.msra.mxu0 %v17
  %49 = vmatpush.msra.mxu0 %v16
  %50 = vmatpush.msra.mxu0 %v15
  %51 = vmatpush.msra.mxu0 %v14
  %52 = vmatmul.f32.gmra.mxu0 %v33
  %v53 = vpop.f32.mrf.mxu0
  %v54 = vadd.f32 %v30, %v53
  %55 = vmatmul.f32.gmra.mxu0 %v34
  %v56 = vpop.f32.mrf.mxu0
  %v57 = vadd.f32 %v31, %v56
  %58 = vmatmul.f32.gmra.mxu0 %v35
  %v59 = vpop.f32.mrf.mxu0
  %v60 = vadd.f32 %v32, %v59
  %61 = vdwg.mxu0
  %vm62 = vcmask 261120
  %63 = vst.msk [vmem:[%s3] sm:$0xff] %vm62, %v54
  %64 = vst.msk [vmem:[%s3 + $0x8] sm:$0xff] %vm62, %v57
  %vm65 = vcmask 253952
  %66 = vst.msk [vmem:[%s3 + $0x10] sm:$0x1] %vm65, %v60
  %s67 = scalar_lea.vmem %s0, 24
  %v68 = vld [vmem:[%s67] sm:$0xff]
  %v69 = vld [vmem:[%s67 + $0x8] sm:$0xff]
  %v70 = vld [vmem:[%s67 + $0x10] sm:$0x1]
  %71 = vmatpush.msra.mxu0 %v29
  %72 = vmatpush.msra.mxu0 %v28
  %73 = vmatpush.msra.mxu0 %v27
  %74 = vmatpush.msra.mxu0 %v26
  %75 = vmatpush.msra.mxu0 %v25
  %76 = vmatpush.msra.mxu0 %v24
  %77 = vmatpush.msra.mxu0 %v23
  %78 = vmatpush.msra.mxu0 %v22
  %79 = vmatpush.msra.mxu0 %v21
  %80 = vmatpush.msra.mxu0 %v20
  %81 = vmatpush.msra.mxu0 %v19
  %82 = vmatpush.msra.mxu0 %v18
  %83 = vmatpush.msra.mxu0 %v17
  %84 = vmatpush.msra.mxu0 %v16
  %85 = vmatpush.msra.mxu0 %v15
  %86 = vmatpush.msra.mxu0 %v14
  %87 = vmatmul.f32.gmra.mxu0 %v68
  %v88 = vpop.f32.mrf.mxu0
  %v89 = vadd.f32 %v30, %v88
  %90 = vmatmul.f32.gmra.mxu0 %v69
  %v91 = vpop.f32.mrf.mxu0
  %v92 = vadd.f32 %v31, %v91
  %93 = vmatmul.f32.gmra.mxu0 %v70
  %v94 = vpop.f32.mrf.mxu0
  %v95 = vadd.f32 %v32, %v94
  %96 = vdwg.mxu0
  %s97 = scalar_lea.vmem %s3, 24
  %98 = vst.msk [vmem:[%s97] sm:$0xff] %vm62, %v89
  %99 = vst.msk [vmem:[%s97 + $0x8] sm:$0xff] %vm62, %v92
  %100 = vst.msk [vmem:[%s97 + $0x10] sm:$0x1] %vm65, %v95
  // Predicated region
  $region14: #{tpu_custom_call.1} parent=0 // pred_check
    _
  $region15: #{tpu_custom_call.1} parent=0 // pred_check_branch
    %102 = sbr.rel (0) target = $region17
  $region16: #{tpu_custom_call.1} parent=0 // pred_region
    _
  $region17: #{tpu_custom_call.1} parent=0 // pred_fallthru
    _
  // Predicated region
  $region18: #{tpu_custom_call.1} parent=0 // pred_check
    _
  $region19: #{tpu_custom_call.1} parent=0 // pred_check_branch
    %104 = sbr.rel (0) target = $region21
  $region20: #{tpu_custom_call.1} parent=0 // pred_region
    _
  $region21: #{tpu_custom_call.1} parent=0 // pred_fallthru
    _

</llo_original>
